<compile_context>
chip_gen: v5e
topology: v5e:2x2
jax: 0.10.0
libtpu: 0.0.40
codegen_flags: <defaults>
</compile_context>

<pallas_src>
import jax
import jax.numpy as jnp
from jax.experimental import pallas as pl
from jax.experimental.pallas import tpu as pltpu

_LANE = 128     # vreg lane width   (last dim)
_SUBLANE = 8    # vreg sublane width (second-to-last dim)


def _round_up(n, m):
    return ((n + m - 1) // m) * m


def _make_fused_kernel(num_layers):
    """Builds a kernel that computes the whole Linear stack in one pass.

    refs = (x_ref, w0_ref, b0_ref, w1_ref, b1_ref, ..., o_ref); all tiles are in VMEM.
    """
    def kernel(*refs):
        x_ref = refs[0]
        o_ref = refs[-1]
        h = x_ref[...].astype(jnp.float32)
        for l in range(num_layers):
            w_ref = refs[1 + 2 * l]
            b_ref = refs[2 + 2 * l]
            # MXU matmul with f32 accumulation; bias broadcast-add on the VPU.
            h = jnp.dot(h, w_ref[...], preferred_element_type=jnp.float32) + b_ref[...]
        o_ref[...] = h.astype(o_ref.dtype)

    return kernel


@jax.jit
def linear_nn_forward(x, params):
    """Forward pass of LinearNN: y = (((x @ W0 + b0) @ W1 + b1) ...) in one pallas_call."""
    B, Din = x.shape
    Dout = params[-1][0].shape[1]
    num_layers = len(params)

    # Zero-pad batch to a sublane multiple and every feature dim to a lane multiple.
    # Exactness: padded input columns multiply zero weight rows; padded output columns
    # get zero weight columns + zero bias, so they stay zero layer after layer.
    B_p = _round_up(B, _SUBLANE)
    Din_p = _round_up(Din, _LANE)
    x_p = jnp.pad(x, ((0, B_p - B), (0, Din_p - Din)))

    flat_inputs = [x_p]
    for w, b in params:
        fi, fo = w.shape
        fi_p, fo_p = _round_up(fi, _LANE), _round_up(fo, _LANE)
        flat_inputs.append(jnp.pad(w, ((0, fi_p - fi), (0, fo_p - fo))))
        flat_inputs.append(jnp.pad(b, ((0, 0), (0, fo_p - fo))))
    Dout_p = _round_up(Dout, _LANE)

    # Total footprint (weights ~200 KB padded, activations a few KB) fits in VMEM on
    # every TPU generation, including v7x's 64 MiB — so: no grid, single invocation,
    # whole arrays resident in VMEM.
    # TODO(synk): if the model is ever scaled up (large Din/Dout), switch to the tiled
    # matmul structure (grid=(M//tm, N//tn, K//tk), f32 VMEM accumulator, bf16 inputs).
    out_p = pl.pallas_call(
        _make_fused_kernel(num_layers),
        out_shape=jax.ShapeDtypeStruct((B_p, Dout_p), x.dtype),
        in_specs=[pl.BlockSpec(memory_space=pltpu.MemorySpace.VMEM)] * len(flat_inputs),
        out_specs=pl.BlockSpec(memory_space=pltpu.MemorySpace.VMEM),
    )(*flat_inputs)

    return out_p[:B, :Dout]


def init_linear_nn_params(key, input_dim, hidden_dims, output_dim, dtype=jnp.float32):
    """Deterministic init mirroring LinearNN's layer structure.

    Returns a list of (W, b) with W shaped (in_features, out_features) — pre-transposed
    vs PyTorch, so the kernel computes y = x @ W + b == x @ W_pt.T + b.
    """
    dims = [input_dim] + list(hidden_dims) + [output_dim]
    params = []
    for i in range(len(dims) - 1):
        fan_in, fan_out = dims[i], dims[i + 1]
        key, wk, bk = jax.random.split(key, 3)
        bound = 1.0 / (fan_in ** 0.5)  # same uniform bound PyTorch Linear uses
        w = jax.random.uniform(wk, (fan_in, fan_out), dtype, -bound, bound)
        b = jax.random.uniform(bk, (1, fan_out), dtype, -bound, bound)
        params.append((w, b))
    return params


if __name__ == "__main__":
    key = jax.random.PRNGKey(0)
    key, xk = jax.random.split(key)

    batch = 8
    input_dim = 32
    hidden_dims = [64, 48]
    output_dim = 16

    x = jax.random.normal(xk, (batch, input_dim), dtype=jnp.float32)
    params = init_linear_nn_params(key, input_dim, hidden_dims, output_dim)

    out = jax.block_until_ready(linear_nn_forward(x, params))

    # Pure-JAX reference check (same math, no Pallas).
    ref = x
    for w, b in params:
        ref = ref @ w + b
    assert out.shape == (batch, output_dim)
    assert jnp.allclose(out, ref, atol=1e-4, rtol=1e-4)

    # Also exercise the hidden_dims == [] branch of the module (single Linear).
    params0 = init_linear_nn_params(jax.random.PRNGKey(1), input_dim, [], output_dim)
    out0 = jax.block_until_ready(linear_nn_forward(x, params0))
    ref0 = x @ params0[0][0] + params0[0][1]
    assert out0.shape == (batch, output_dim)
    assert jnp.allclose(out0, ref0, atol=1e-4, rtol=1e-4)

    print("KERNEL_OK")
</pallas_src>

<mosaic_0001>
module attributes {stable_mosaic.version = 11 : i64} {
  func.func @kernel(%arg0: memref<8x128xf32, #tpu.memory_space<vmem>>, %arg1: memref<128x128xf32, #tpu.memory_space<vmem>>, %arg2: memref<1x128xf32, #tpu.memory_space<vmem>>, %arg3: memref<128x128xf32, #tpu.memory_space<vmem>>, %arg4: memref<1x128xf32, #tpu.memory_space<vmem>>, %arg5: memref<128x128xf32, #tpu.memory_space<vmem>>, %arg6: memref<1x128xf32, #tpu.memory_space<vmem>>, %arg7: memref<8x128xf32, #tpu.memory_space<vmem>>) attributes {dimension_semantics = [], scalar_prefetch = 0 : i64, scratch_operands = 0 : i64, tpu.core_type = #tpu.core_type<tc>} {
    %c0 = arith.constant 0 : index
    %c0_0 = arith.constant 0 : index
    %0 = vector.load %arg0[%c0, %c0_0] : memref<8x128xf32, #tpu.memory_space<vmem>>, vector<8x128xf32>
    %c0_1 = arith.constant 0 : index
    %c0_2 = arith.constant 0 : index
    %1 = vector.load %arg1[%c0_1, %c0_2] : memref<128x128xf32, #tpu.memory_space<vmem>>, vector<128x128xf32>
    %cst = arith.constant dense<0.000000e+00> : vector<8x128xf32>
    %2 = tpu.matmul %0, %1, %cst {dimension_numbers = #tpu.dot_dimension_numbers<[1], [0], [0], [1], [0, 0, 1, 1], [], []>} : vector<8x128xf32>, vector<128x128xf32>, vector<8x128xf32> -> vector<8x128xf32>
    %c0_3 = arith.constant 0 : index
    %c0_4 = arith.constant 0 : index
    %3 = vector.load %arg2[%c0_3, %c0_4] : memref<1x128xf32, #tpu.memory_space<vmem>>, vector<1x128xf32>
    %4 = vector.broadcast %3 : vector<1x128xf32> to vector<8x128xf32>
    %5 = arith.addf %2, %4 : vector<8x128xf32>
    %c0_5 = arith.constant 0 : index
    %c0_6 = arith.constant 0 : index
    %6 = vector.load %arg3[%c0_5, %c0_6] : memref<128x128xf32, #tpu.memory_space<vmem>>, vector<128x128xf32>
    %cst_7 = arith.constant dense<0.000000e+00> : vector<8x128xf32>
    %7 = tpu.matmul %5, %6, %cst_7 {dimension_numbers = #tpu.dot_dimension_numbers<[1], [0], [0], [1], [0, 0, 1, 1], [], []>} : vector<8x128xf32>, vector<128x128xf32>, vector<8x128xf32> -> vector<8x128xf32>
    %c0_8 = arith.constant 0 : index
    %c0_9 = arith.constant 0 : index
    %8 = vector.load %arg4[%c0_8, %c0_9] : memref<1x128xf32, #tpu.memory_space<vmem>>, vector<1x128xf32>
    %9 = vector.broadcast %8 : vector<1x128xf32> to vector<8x128xf32>
    %10 = arith.addf %7, %9 : vector<8x128xf32>
    %c0_10 = arith.constant 0 : index
    %c0_11 = arith.constant 0 : index
    %11 = vector.load %arg5[%c0_10, %c0_11] : memref<128x128xf32, #tpu.memory_space<vmem>>, vector<128x128xf32>
    %cst_12 = arith.constant dense<0.000000e+00> : vector<8x128xf32>
    %12 = tpu.matmul %10, %11, %cst_12 {dimension_numbers = #tpu.dot_dimension_numbers<[1], [0], [0], [1], [0, 0, 1, 1], [], []>} : vector<8x128xf32>, vector<128x128xf32>, vector<8x128xf32> -> vector<8x128xf32>
    %c0_13 = arith.constant 0 : index
    %c0_14 = arith.constant 0 : index
    %13 = vector.load %arg6[%c0_13, %c0_14] : memref<1x128xf32, #tpu.memory_space<vmem>>, vector<1x128xf32>
    %14 = vector.broadcast %13 : vector<1x128xf32> to vector<8x128xf32>
    %15 = arith.addf %12, %14 : vector<8x128xf32>
    %c0_15 = arith.constant 0 : index
    %c0_16 = arith.constant 0 : index
    %16 = vector.load %arg7[%c0_15, %c0_16] : memref<8x128xf32, #tpu.memory_space<vmem>>, vector<8x128xf32>
    tpu.vector_store %arg7[%c0_15, %c0_16], %15 {strides = array<i32>} : memref<8x128xf32, #tpu.memory_space<vmem>>, vector<8x128xf32>,
    return
  }
}

</mosaic_0001>

<llo_original>
// kernel: linear_nn_forward.1
$region0: #{linear_nn_forward.1}
  #allocation0 [shape = 'u32[]', space=smem, size = 0x4, offset = 0x4, fixed_abs, tag = 'smem constant byte address 0x4 - core index']
  #allocation1 [shape = 'u32[72,128]{1,0:T(1,128)}', space=vmem, size = 0x9000, scoped, tag = 'internal scratch']
  %s0 = inlined_call_operand.vmem [shape: f32[8,128], index: 0, kind: input, shape index: {}]
  %s1 = inlined_call_operand.vmem [shape: f32[128,128], index: 1, kind: input, shape index: {}]
  %s2 = inlined_call_operand.vmem [shape: f32[1,128], index: 2, kind: input, shape index: {}]
  %s3 = inlined_call_operand.vmem [shape: f32[128,128], index: 3, kind: input, shape index: {}]
  %s4 = inlined_call_operand.vmem [shape: f32[1,128], index: 4, kind: input, shape index: {}]
  %s5 = inlined_call_operand.vmem [shape: f32[128,128], index: 5, kind: input, shape index: {}]
  %s6 = inlined_call_operand.vmem [shape: f32[1,128], index: 6, kind: input, shape index: {}]
  %s7 = inlined_call_operand.hbm [shape: f32[8,128], index: 7, kind: output, shape index: {}]
  %s8 = sld [smem:[#allocation0]]
  $region38: #{linear_nn_forward.1} parent=0
    _
  %s10 = ssub.s32 1, %s8
  %s11 = scalar_select 0, %s10, %s8
  $region1: #{linear_nn_forward.1} parent=0
    #allocation2 [shape = 'u8[4096]{0}', space=vmem, size = 0x1000, scoped, tag = 'output window, operand 0, single buffered']
    #allocation3 [shape = 's32[1]{0}', space=sflag, size = 0x4, scoped, tag = 'scoped memory for linear_nn_forward.1']
    %12 = vsyncpa [#allocation3], 0
    // Predicated region
    $region2: #{linear_nn_forward.1} parent=1 // pred_check
      _
    $region3: #{linear_nn_forward.1} parent=1 // pred_check_branch
      %14 = sbr.rel (0) target = $region5
    $region4: #{linear_nn_forward.1} parent=1 // pred_region
      _
    $region5: #{linear_nn_forward.1} parent=1 // pred_fallthru
      _
    // Predicated region
    $region6: #{linear_nn_forward.1} parent=1 // pred_check
      _
    $region7: #{linear_nn_forward.1} parent=1 // pred_check_branch
      %16 = sbr.rel (0) target = $region9
    $region8: #{linear_nn_forward.1} parent=1 // pred_region
      _
    $region9: #{linear_nn_forward.1} parent=1 // pred_fallthru
      _
    // Predicated region
    $region10: #{linear_nn_forward.1} parent=1 // pred_check
      _
    $region11: #{linear_nn_forward.1} parent=1 // pred_check_branch
      %18 = sbr.rel (0) target = $region13
    $region12: #{linear_nn_forward.1} parent=1 // pred_region
      _
    $region13: #{linear_nn_forward.1} parent=1 // pred_fallthru
      _
    // Predicated region
    $region14: #{linear_nn_forward.1} parent=1 // pred_check
      _
    $region15: #{linear_nn_forward.1} parent=1 // pred_check_branch
      %20 = sbr.rel (0) target = $region17
    $region16: #{linear_nn_forward.1} parent=1 // pred_region
      _
    $region17: #{linear_nn_forward.1} parent=1 // pred_fallthru
      _
    // Predicated region
    $region18: #{linear_nn_forward.1} parent=1 // pred_check
      _
    $region19: #{linear_nn_forward.1} parent=1 // pred_check_branch
      %22 = sbr.rel (0) target = $region21
    $region20: #{linear_nn_forward.1} parent=1 // pred_region
      _
    $region21: #{linear_nn_forward.1} parent=1 // pred_fallthru
      _
    // Predicated region
    $region22: #{linear_nn_forward.1} parent=1 // pred_check
      _
    $region23: #{linear_nn_forward.1} parent=1 // pred_check_branch
      %24 = sbr.rel (0) target = $region25
    $region24: #{linear_nn_forward.1} parent=1 // pred_region
      _
    $region25: #{linear_nn_forward.1} parent=1 // pred_fallthru
      _
    // Predicated region
    $region26: #{linear_nn_forward.1} parent=1 // pred_check
      _
    $region27: #{linear_nn_forward.1} parent=1 // pred_check_branch
      %26 = sbr.rel (0) target = $region29
    $region28: #{linear_nn_forward.1} parent=1 // pred_region
      _
    $region29: #{linear_nn_forward.1} parent=1 // pred_fallthru
      _
    %v27 = vld [vmem:[%s0] sm:$0xff]
    %v28 = vld [vmem:[%s1] sm:$0xff]
    %v29 = vld [vmem:[%s1 + $0x8] sm:$0xff]
    %v30 = vld [vmem:[%s1 + $0x10] sm:$0xff]
    %v31 = vld [vmem:[%s1 + $0x18] sm:$0xff]
    %v32 = vld [vmem:[%s1 + $0x20] sm:$0xff]
    %v33 = vld [vmem:[%s1 + $0x28] sm:$0xff]
    %v34 = vld [vmem:[%s1 + $0x30] sm:$0xff]
    %v35 = vld [vmem:[%s1 + $0x38] sm:$0xff]
    %v36 = vld [vmem:[%s1 + $0x40] sm:$0xff]
    %v37 = vld [vmem:[%s1 + $0x48] sm:$0xff]
    %v38 = vld [vmem:[%s1 + $0x50] sm:$0xff]
    %v39 = vld [vmem:[%s1 + $0x58] sm:$0xff]
    %v40 = vld [vmem:[%s1 + $0x60] sm:$0xff]
    %v41 = vld [vmem:[%s1 + $0x68] sm:$0xff]
    %v42 = vld [vmem:[%s1 + $0x70] sm:$0xff]
    %v43 = vld [vmem:[%s1 + $0x78] sm:$0xff]
    %v44 = vld [vmem:[%s2] sm:$0x1]
    %v46 = vperm.slane %v44, 0
    %48 = vmatpush.msra.mxu0 %v43
    %49 = vmatpush.msra.mxu0 %v42
    %50 = vmatpush.msra.mxu0 %v41
    %51 = vmatpush.msra.mxu0 %v40
    %52 = vmatpush.msra.mxu0 %v39
    %53 = vmatpush.msra.mxu0 %v38
    %54 = vmatpush.msra.mxu0 %v37
    %55 = vmatpush.msra.mxu0 %v36
    %56 = vmatpush.msra.mxu0 %v35
    %57 = vmatpush.msra.mxu0 %v34
    %58 = vmatpush.msra.mxu0 %v33
    %59 = vmatpush.msra.mxu0 %v32
    %60 = vmatpush.msra.mxu0 %v31
    %61 = vmatpush.msra.mxu0 %v30
    %62 = vmatpush.msra.mxu0 %v29
    %63 = vmatpush.msra.mxu0 %v28
    %64 = vmatmul.f32.gmra.mxu0 %v27
    %v65 = vpop.f32.mrf.mxu0
    %v66 = vadd.f32 %v46, %v65
    %67 = vdwg.mxu0
    %v68 = vld [vmem:[%s3] sm:$0xff]
    %v69 = vld [vmem:[%s3 + $0x8] sm:$0xff]
    %v70 = vld [vmem:[%s3 + $0x10] sm:$0xff]
    %v71 = vld [vmem:[%s3 + $0x18] sm:$0xff]
    %v72 = vld [vmem:[%s3 + $0x20] sm:$0xff]
    %v73 = vld [vmem:[%s3 + $0x28] sm:$0xff]
    %v74 = vld [vmem:[%s3 + $0x30] sm:$0xff]
    %v75 = vld [vmem:[%s3 + $0x38] sm:$0xff]
    %v76 = vld [vmem:[%s3 + $0x40] sm:$0xff]
    %v77 = vld [vmem:[%s3 + $0x48] sm:$0xff]
    %v78 = vld [vmem:[%s3 + $0x50] sm:$0xff]
    %v79 = vld [vmem:[%s3 + $0x58] sm:$0xff]
    %v80 = vld [vmem:[%s3 + $0x60] sm:$0xff]
    %v81 = vld [vmem:[%s3 + $0x68] sm:$0xff]
    %v82 = vld [vmem:[%s3 + $0x70] sm:$0xff]
    %v83 = vld [vmem:[%s3 + $0x78] sm:$0xff]
    %v84 = vld [vmem:[%s4] sm:$0x1]
    %v86 = vperm.slane %v84, 0
    %88 = vmatpush.msra.mxu0 %v83
    %89 = vmatpush.msra.mxu0 %v82
    %90 = vmatpush.msra.mxu0 %v81
    %91 = vmatpush.msra.mxu0 %v80
    %92 = vmatpush.msra.mxu0 %v79
    %93 = vmatpush.msra.mxu0 %v78
    %94 = vmatpush.msra.mxu0 %v77
    %95 = vmatpush.msra.mxu0 %v76
    %96 = vmatpush.msra.mxu0 %v75
    %97 = vmatpush.msra.mxu0 %v74
    %98 = vmatpush.msra.mxu0 %v73
    %99 = vmatpush.msra.mxu0 %v72
    %100 = vmatpush.msra.mxu0 %v71
    %101 = vmatpush.msra.mxu0 %v70
    %102 = vmatpush.msra.mxu0 %v69
    %103 = vmatpush.msra.mxu0 %v68
    %104 = vmatmul.f32.gmra.mxu0 %v66
    %v105 = vpop.f32.mrf.mxu0
    %v106 = vadd.f32 %v86, %v105
    %107 = vdwg.mxu0
    %v108 = vld [vmem:[%s5] sm:$0xff]
    %v109 = vld [vmem:[%s5 + $0x8] sm:$0xff]
    %v110 = vld [vmem:[%s5 + $0x10] sm:$0xff]
    %v111 = vld [vmem:[%s5 + $0x18] sm:$0xff]
    %v112 = vld [vmem:[%s5 + $0x20] sm:$0xff]
    %v113 = vld [vmem:[%s5 + $0x28] sm:$0xff]
    %v114 = vld [vmem:[%s5 + $0x30] sm:$0xff]
    %v115 = vld [vmem:[%s5 + $0x38] sm:$0xff]
    %v116 = vld [vmem:[%s5 + $0x40] sm:$0xff]
    %v117 = vld [vmem:[%s5 + $0x48] sm:$0xff]
    %v118 = vld [vmem:[%s5 + $0x50] sm:$0xff]
    %v119 = vld [vmem:[%s5 + $0x58] sm:$0xff]
    %v120 = vld [vmem:[%s5 + $0x60] sm:$0xff]
    %v121 = vld [vmem:[%s5 + $0x68] sm:$0xff]
    %v122 = vld [vmem:[%s5 + $0x70] sm:$0xff]
    %v123 = vld [vmem:[%s5 + $0x78] sm:$0xff]
    %v124 = vld [vmem:[%s6] sm:$0x1]
    %v126 = vperm.slane %v124, 0
    %128 = vmatpush.msra.mxu0 %v123
    %129 = vmatpush.msra.mxu0 %v122
    %130 = vmatpush.msra.mxu0 %v121
    %131 = vmatpush.msra.mxu0 %v120
    %132 = vmatpush.msra.mxu0 %v119
    %133 = vmatpush.msra.mxu0 %v118
    %134 = vmatpush.msra.mxu0 %v117
    %135 = vmatpush.msra.mxu0 %v116
    %136 = vmatpush.msra.mxu0 %v115
    %137 = vmatpush.msra.mxu0 %v114
    %138 = vmatpush.msra.mxu0 %v113
    %139 = vmatpush.msra.mxu0 %v112
    %140 = vmatpush.msra.mxu0 %v111
    %141 = vmatpush.msra.mxu0 %v110
    %142 = vmatpush.msra.mxu0 %v109
    %143 = vmatpush.msra.mxu0 %v108
    %144 = vmatmul.f32.gmra.mxu0 %v106
    %v145 = vpop.f32.mrf.mxu0
    %v146 = vadd.f32 %v126, %v145
    %147 = vdwg.mxu0
    %148 = vst [vmem:[#allocation2] sm:$0xff] %v146
    // Predicated region
    $region30: #{linear_nn_forward.1} parent=1 // pred_check
      _
    $region31: #{linear_nn_forward.1} parent=1 // pred_check_branch
      %150 = sbr.rel (0) target = $region33
    $region32: #{linear_nn_forward.1} parent=1 // pred_region
      %152 = vsyncadd [#allocation3], 0
      %s154 = sshll.u32 [#allocation2], 4
      %s155 = int_to_ptr.vmem [resolvable:$true] %s154
      %s156 = sshll.u32 %s7, 4
      %s157 = int_to_ptr.hbm [resolvable:$true] %s156
      %159 = dma.vmem_to_hbm [thread:$0]  %s155, 128, %s157, [#allocation3]
    $region33: #{linear_nn_forward.1} parent=1 // pred_fallthru
      _
    // Predicated region
    $region34: #{linear_nn_forward.1} parent=1 // pred_check
      _
    $region35: #{linear_nn_forward.1} parent=1 // pred_check_branch
      %161 = sbr.rel (0) target = $region37
    $region36: #{linear_nn_forward.1} parent=1 // pred_region
      %163 = dma.done [#allocation3], 128
    $region37: #{linear_nn_forward.1} parent=1 // pred_fallthru
      _
    %164 = vsyncpa [#allocation3], 1

</llo_original>
